<compile_context>
chip_gen: v6e
topology: v6e:2x2x1
jax: 0.10.0
libtpu: 0.0.40
codegen_flags: <defaults>
</compile_context>

<pallas_src>
import math

import jax
import jax.numpy as jnp
from jax.experimental import pallas as pl
from jax.experimental.pallas import tpu as pltpu

_LANE = 128
_TARGET_BLOCK_BYTES = 4 * 1024 * 1024   # ~4 MiB x block: safe on all generations
_VMEM_LIMIT_BYTES = 32 * 1024 * 1024    # <= half of v7x per-TC VMEM


def _freq_weight_kernel(x_ref, g_ref, o_ref):
    # x_ref, g_ref, o_ref: (rb, nn).  Gate is pre-sigmoid'ed / pre-tiled / cast
    # in the wrapper and has a constant block index (loaded into VMEM once),
    # so this is a pure VPU elementwise multiply.
    o_ref[...] = (x_ref[...] * g_ref[...]).astype(o_ref.dtype)


def _sublane_tile(itemsize):
    if itemsize >= 4:
        return 8
    if itemsize == 2:
        return 16
    return 32


def frequency_weighting(x, weight):
    """x: (B, C, T, F); weight: (1, C, 1, F). Returns x * sigmoid(weight)."""
    B, C, T, F = x.shape
    assert weight.shape == (1, C, 1, F)

    itemsize = jnp.dtype(x.dtype).itemsize
    rows, TF = B * C, T * F

    # Row (sublane) tile: a multiple of C so every block's rows cycle channels
    # in the same order (gate block index constant), sized to the dtype's
    # sublane packing; fall back to the full row extent (also a multiple of C).
    sub = _sublane_tile(itemsize)
    rb = math.lcm(C, sub)
    if rb > rows:
        rb = rows

    # Column (lane) tile: multiple of lcm(F, 128) so interior blocks are
    # unmasked full-lane stores AND the per-channel gate pattern repeats
    # identically in every column block; fallback = whole row width.
    L = math.lcm(F, _LANE)
    if TF >= L:
        budget_cols = max(1, _TARGET_BLOCK_BYTES // (rb * itemsize))
        nn = max(L, (budget_cols // L) * L)
        nn = min(nn, (TF // L) * L)
    else:
        nn = TF

    n_row = pl.cdiv(rows, rb)
    n_col = pl.cdiv(TF, nn)

    # Hoisted sigmoid (f32 for accuracy), gate tiled to exactly one block.
    sig = jax.nn.sigmoid(weight.astype(jnp.float32)).astype(x.dtype).reshape(C, F)
    gate = jnp.tile(sig, (rb // C, nn // F))          # (rb, nn) -- tiny vs x

    x2 = x.reshape(rows, TF)

    # Axis with more blocks goes first (v7x megacore split). No padding / no
    # output slicing: the (at most one) ragged edge block per axis is masked.
    if n_col >= n_row:
        grid = (n_col, n_row)
        xy_map = lambda j, i: (i, j)
    else:
        grid = (n_row, n_col)
        xy_map = lambda i, j: (i, j)
    g_map = lambda a, b: (0, 0)

    cost = pl.CostEstimate(
        flops=rows * TF,
        transcendentals=0,
        bytes_accessed=(2 * rows * TF + rb * nn) * itemsize,
    )

    out2 = pl.pallas_call(
        _freq_weight_kernel,
        out_shape=jax.ShapeDtypeStruct((rows, TF), x.dtype),
        grid_spec=pltpu.PrefetchScalarGridSpec(
            num_scalar_prefetch=0,
            grid=grid,
            in_specs=[
                pl.BlockSpec((rb, nn), xy_map),   # x block
                pl.BlockSpec((rb, nn), g_map),    # gate block (DMA'd once)
            ],
            out_specs=pl.BlockSpec((rb, nn), xy_map),
        ),
        compiler_params=pltpu.CompilerParams(
            dimension_semantics=("parallel", "parallel"),
            vmem_limit_bytes=_VMEM_LIMIT_BYTES,
        ),
        cost_estimate=cost,
    )(x2, gate)

    return out2.reshape(B, C, T, F)


if __name__ == "__main__":
    key = jax.random.PRNGKey(0)

    # --- Test 1: shapes consistent with the module (batch=2, channels=4,
    # time=16, freq_dim=16), weight init = ones (as in nn.Parameter(torch.ones)).
    B, C, T, F = 2, 4, 16, 16
    x = jax.random.normal(key, (B, C, T, F), dtype=jnp.float32)
    weight = jnp.ones((1, C, 1, F), dtype=jnp.float32)

    out = jax.block_until_ready(frequency_weighting(x, weight))
    ref = x * jax.nn.sigmoid(weight)
    assert out.shape == (B, C, T, F)
    assert jnp.allclose(out, ref, atol=1e-6, rtol=1e-6), "mismatch vs reference"

    # --- Test 2: mixed precision (bf16 x, f32 weight) and a freq dim that is
    # not a multiple of 128 (whole-row fallback path, lane-edge masking).
    B2, C2, T2, F2 = 2, 3, 16, 20
    k1, k2 = jax.random.split(key)
    xb = jax.random.normal(k1, (B2, C2, T2, F2), dtype=jnp.bfloat16)
    wb = jax.random.normal(k2, (1, C2, 1, F2), dtype=jnp.float32)
    outb = jax.block_until_ready(frequency_weighting(xb, wb))
    refb = xb * jax.nn.sigmoid(wb).astype(jnp.bfloat16)
    assert outb.shape == (B2, C2, T2, F2)
    assert jnp.allclose(outb.astype(jnp.float32), refb.astype(jnp.float32),
                        atol=2e-2, rtol=2e-2), "bf16 mismatch vs reference"

    # --- Test 3: ragged row AND column edge blocks (rows=12 with rb=8,
    # T*F=384 with nn=256) -> exercises Pallas edge masking, no pad/slice.
    B3, C3, T3, F3 = 3, 4, 24, 16
    k3, k4 = jax.random.split(k1)
    xc = jax.random.normal(k3, (B3, C3, T3, F3), dtype=jnp.float32)
    wc = jax.random.normal(k4, (1, C3, 1, F3), dtype=jnp.float32)
    outc = jax.block_until_ready(frequency_weighting(xc, wc))
    refc = xc * jax.nn.sigmoid(wc)
    assert outc.shape == (B3, C3, T3, F3)
    assert jnp.allclose(outc, refc, atol=1e-6, rtol=1e-6), "ragged-edge mismatch"

    print("KERNEL_OK")
</pallas_src>

<mosaic_0001>
module attributes {stable_mosaic.version = 11 : i64} {
  func.func @_freq_weight_kernel(%arg0: i32, %arg1: i32, %arg2: memref<8x256xf32, #tpu.memory_space<vmem>>, %arg3: memref<8x256xf32, #tpu.memory_space<vmem>>, %arg4: memref<8x256xf32, #tpu.memory_space<vmem>>) attributes {dimension_semantics = [#tpu.dimension_semantics<parallel>, #tpu.dimension_semantics<parallel>], iteration_bounds = array<i64: 1, 1>, scalar_prefetch = 0 : i64, scratch_operands = 0 : i64, tpu.core_type = #tpu.core_type<tc>, window_params = [{transform_indices = @transform_0, window_bounds = array<i64: 8, 256>}, {pipeline_mode = #tpu.pipeline_mode<synchronous>, transform_indices = @transform_1, window_bounds = array<i64: 8, 256>}, {transform_indices = @transform_2, window_bounds = array<i64: 8, 256>}]} {
    %c0 = arith.constant 0 : index
    %c0_0 = arith.constant 0 : index
    %0 = vector.load %arg2[%c0, %c0_0] : memref<8x256xf32, #tpu.memory_space<vmem>>, vector<8x256xf32>
    %c0_1 = arith.constant 0 : index
    %c0_2 = arith.constant 0 : index
    %1 = vector.load %arg3[%c0_1, %c0_2] : memref<8x256xf32, #tpu.memory_space<vmem>>, vector<8x256xf32>
    %2 = arith.mulf %0, %1 : vector<8x256xf32>
    %c0_3 = arith.constant 0 : index
    %c0_4 = arith.constant 0 : index
    %3 = vector.load %arg4[%c0_3, %c0_4] : memref<8x256xf32, #tpu.memory_space<vmem>>, vector<8x256xf32>
    tpu.vector_store %arg4[%c0_3, %c0_4], %2 {strides = array<i32>} : memref<8x256xf32, #tpu.memory_space<vmem>>, vector<8x256xf32>,
    return
  }
  func.func @transform_0(%arg0: i32, %arg1: i32) -> (i32, i32) {
    %c0_i32 = arith.constant 0 : i32
    return %arg1, %arg0 : i32, i32
  }
  func.func @transform_1(%arg0: i32, %arg1: i32) -> (i32, i32) {
    %c0_i32 = arith.constant 0 : i32
    %c0_i32_0 = arith.constant 0 : i32
    %c0_i32_1 = arith.constant 0 : i32
    return %c0_i32, %c0_i32_0 : i32, i32
  }
  func.func @transform_2(%arg0: i32, %arg1: i32) -> (i32, i32) {
    %c0_i32 = arith.constant 0 : i32
    return %arg1, %arg0 : i32, i32
  }
}

</mosaic_0001>

<llo_original>
// kernel: tpu_custom_call.1
$region0: #{tpu_custom_call.1}
  #allocation0 [shape = 'u32[]', space=smem, size = 0x4, offset = 0x4, fixed_abs, tag = 'smem constant byte address 0x4 - core index']
  #allocation1 [shape = 'u32[144,128]{1,0:T(1,128)}', space=vmem, size = 0x12000, scoped, tag = 'internal scratch']
  %s0 = inlined_call_operand.hbm [shape: f32[8,256], index: 0, kind: input, shape index: {}]
  %s1 = inlined_call_operand.hbm [shape: f32[8,256], index: 1, kind: input, shape index: {}]
  %s2 = inlined_call_operand.hbm [shape: f32[8,256], index: 2, kind: output, shape index: {}]
  %s3 = sld [smem:[#allocation0]]
  $region26: #{tpu_custom_call.1} parent=0
    _
  %s5 = ssub.s32 1, %s3
  %s6 = scalar_select 0, %s5, %s3
  $region1: #{tpu_custom_call.1} parent=0
    #allocation2 [shape = 'u8[8192]{0}', space=vmem, size = 0x2000, scoped, tag = 'input window, operand 0, single buffered']
    #allocation3 [shape = 's32[1]{0}', space=sflag, size = 0x4, scoped, tag = 'scoped memory for tpu_custom_call.1']
    #allocation4 [shape = 's32[1]{0}', space=sflag, size = 0x4, scoped, tag = 'scoped memory for tpu_custom_call.1']
    #allocation5 [shape = 'u8[8192]{0}', space=vmem, size = 0x2000, scoped, tag = 'input window, operand 1, single buffered']
    #allocation6 [shape = 's32[1]{0}', space=sflag, size = 0x4, scoped, tag = 'scoped memory for tpu_custom_call.1']
    #allocation7 [shape = 'u8[8192]{0}', space=vmem, size = 0x2000, scoped, tag = 'output window, operand 0, single buffered']
    %7 = vsyncpa [#allocation3], 0
    %8 = vsyncpa [#allocation6], 0
    %9 = vsyncpa [#allocation4], 0
    // Predicated region
    $region2: #{tpu_custom_call.1} parent=1 // pred_check
      _
    $region3: #{tpu_custom_call.1} parent=1 // pred_check_branch
      %11 = sbr.rel (0) target = $region5
    $region4: #{tpu_custom_call.1} parent=1 // pred_region
      %s13 = ssub.s32 256, 256
      %14 = vsyncadd [#allocation3], %s13
      %s16 = sshll.u32 [#allocation2], 4
      %s17 = int_to_ptr.vmem [resolvable:$true] %s16
      %19 = dma.hbm_to_vmem [thread:$0]  %s0, 256, %s17, [#allocation3]
    $region5: #{tpu_custom_call.1} parent=1 // pred_fallthru
      _
    // Predicated region
    $region6: #{tpu_custom_call.1} parent=1 // pred_check
      _
    $region7: #{tpu_custom_call.1} parent=1 // pred_check_branch
      %21 = sbr.rel (0) target = $region9
    $region8: #{tpu_custom_call.1} parent=1 // pred_region
      %s23 = ssub.s32 256, 256
      %24 = vsyncadd [#allocation6], %s23
      %s26 = sshll.u32 [#allocation5], 4
      %s27 = int_to_ptr.vmem [resolvable:$true] %s26
      %29 = dma.hbm_to_vmem [thread:$0]  %s1, 256, %s27, [#allocation6]
    $region9: #{tpu_custom_call.1} parent=1 // pred_fallthru
      _
    // Predicated region
    $region10: #{tpu_custom_call.1} parent=1 // pred_check
      _
    $region11: #{tpu_custom_call.1} parent=1 // pred_check_branch
      %31 = sbr.rel (0) target = $region13
    $region12: #{tpu_custom_call.1} parent=1 // pred_region
      %32 = dma.done [#allocation3], 256
    $region13: #{tpu_custom_call.1} parent=1 // pred_fallthru
      _
    // Predicated region
    $region14: #{tpu_custom_call.1} parent=1 // pred_check
      _
    $region15: #{tpu_custom_call.1} parent=1 // pred_check_branch
      %34 = sbr.rel (0) target = $region17
    $region16: #{tpu_custom_call.1} parent=1 // pred_region
      %35 = dma.done [#allocation6], 256
    $region17: #{tpu_custom_call.1} parent=1 // pred_fallthru
      _
    %v36 = vld [vmem:[#allocation2] sm:$0xff]
    %v37 = vld [vmem:[#allocation2 + $0x8] sm:$0xff]
    %v38 = vld [vmem:[#allocation5] sm:$0xff]
    %v39 = vld [vmem:[#allocation5 + $0x8] sm:$0xff]
    %v40 = vmul.f32 %v36, %v38
    %v41 = vmul.f32 %v37, %v39
    %42 = vst [vmem:[#allocation7] sm:$0xff] %v40
    %43 = vst [vmem:[#allocation7 + $0x8] sm:$0xff] %v41
    // Predicated region
    $region18: #{tpu_custom_call.1} parent=1 // pred_check
      _
    $region19: #{tpu_custom_call.1} parent=1 // pred_check_branch
      %45 = sbr.rel (0) target = $region21
    $region20: #{tpu_custom_call.1} parent=1 // pred_region
      %s47 = ssub.s32 256, 256
      %48 = vsyncadd [#allocation4], %s47
      %s50 = sshll.u32 [#allocation7], 4
      %s51 = int_to_ptr.vmem [resolvable:$true] %s50
      %53 = dma.vmem_to_hbm [thread:$0]  %s51, 256, %s2, [#allocation4]
    $region21: #{tpu_custom_call.1} parent=1 // pred_fallthru
      _
    // Predicated region
    $region22: #{tpu_custom_call.1} parent=1 // pred_check
      _
    $region23: #{tpu_custom_call.1} parent=1 // pred_check_branch
      %55 = sbr.rel (0) target = $region25
    $region24: #{tpu_custom_call.1} parent=1 // pred_region
      %56 = dma.done [#allocation4], 256
    $region25: #{tpu_custom_call.1} parent=1 // pred_fallthru
      _
    %57 = vsyncpa [#allocation3], 1
    %58 = vsyncpa [#allocation6], 1
    %59 = vsyncpa [#allocation4], 1

</llo_original>
